<compile_context>
chip_gen: v6e
topology: v6e:2x2x1
jax: 0.10.0
libtpu: 0.0.40
codegen_flags: <defaults>
</compile_context>

<pallas_src>
import jax
import jax.numpy as jnp
from jax.experimental import pallas as pl
from jax.experimental.pallas import tpu as pltpu

_LANE = 128
_SUBLANE = 8


def _round_up(n, m):
    return ((n + m - 1) // m) * m


def _rnn_seq_kernel(x_ref, h0_ref,
                    w_in_ref, b_in_ref,
                    w_rec_ref, b_rec_ref,
                    w_out_ref, b_out_ref,
                    out_ref, h_final_ref,
                    h_scr):
    t = pl.program_id(1)

    # (Re)initialize the carried hidden state at the start of each sequence /
    # batch tile.
    @pl.when(t == 0)
    def _init():
        h_scr[...] = h0_ref[...]

    x = x_ref[0]          # (BM, I)  f32
    h = h_scr[...]        # (BM, Hp) f32

    # input_transformed = tanh(input_layer(x))   (bf16 MXU, f32 accumulate)
    it = jnp.tanh(
        jnp.dot(x.astype(jnp.bfloat16), w_in_ref[...],
                preferred_element_type=jnp.float32)
        + b_in_ref[...])

    # recurrent_output = tanh(recurrent_layer(h) + input_transformed)
    rec = jnp.tanh(
        jnp.dot(h.astype(jnp.bfloat16), w_rec_ref[...],
                preferred_element_type=jnp.float32)
        + b_rec_ref[...]
        + it)

    # hidden_state <- recurrent_output (stays resident in VMEM scratch)
    h_scr[...] = rec
    h_final_ref[...] = rec.astype(h_final_ref.dtype)

    # output = relu(output_layer(recurrent_output))
    out = (jnp.dot(rec.astype(jnp.bfloat16), w_out_ref[...],
                   preferred_element_type=jnp.float32)
           + b_out_ref[...])
    out_ref[0] = jnp.maximum(out, 0.0).astype(out_ref.dtype)


@jax.jit
def rnn_forward_sequence(x_seq, h0, params):
    """Run T recurrent steps in a single pallas_call.

    x_seq: (T, B, input_size), h0: (B, hidden_size).
    Returns (outputs (T, B, output_size), final_hidden (B, hidden_size)).
    """
    w_in, b_in, w_rec, b_rec, w_out, b_out = params
    T, B, I = x_seq.shape
    H = w_in.shape[1]
    O = w_out.shape[1]

    Hp = _round_up(H, _LANE)          # lane-dense hidden
    Op = _round_up(O, _LANE)          # lane-dense output
    Bp = _round_up(B, _SUBLANE)       # sublane-dense batch
    BM = min(Bp, 128)                 # batch tile (M dim of the matmuls)
    Bp = _round_up(Bp, BM)
    nb = Bp // BM

    f32 = jnp.float32
    bf16 = jnp.bfloat16

    def pad2(a, r, c, dtype):
        return (jnp.zeros((r, c), dtype)
                .at[:a.shape[0], :a.shape[1]].set(a.astype(dtype)))

    # bf16 MXU operands (zero-padded rows/cols are exact no-ops).
    w_in_p = pad2(w_in, I, Hp, bf16)
    w_rec_p = pad2(w_rec, Hp, Hp, bf16)
    w_out_p = pad2(w_out, Hp, Op, bf16)
    # Biases stay f32 (bias-add / tanh / relu done in f32).
    b_in_p = pad2(b_in, 1, Hp, f32)
    b_rec_p = pad2(b_rec, 1, Hp, f32)
    b_out_p = pad2(b_out, 1, Op, f32)

    x_p = jnp.zeros((T, Bp, I), f32).at[:, :B, :].set(x_seq.astype(f32))
    h0_p = jnp.zeros((Bp, Hp), f32).at[:B, :H].set(h0.astype(f32))

    const2 = lambda b, t: (0, 0)

    out_padded, h_final_padded = pl.pallas_call(
        _rnn_seq_kernel,
        out_shape=(
            jax.ShapeDtypeStruct((T, Bp, Op), f32),
            jax.ShapeDtypeStruct((Bp, Hp), f32),
        ),
        grid_spec=pltpu.PrefetchScalarGridSpec(
            num_scalar_prefetch=0,
            grid=(nb, T),
            in_specs=[
                pl.BlockSpec((1, BM, I), lambda b, t: (t, b, 0)),   # x
                pl.BlockSpec((BM, Hp), lambda b, t: (b, 0)),        # h0
                pl.BlockSpec((I, Hp), const2),                      # W_in  (resident)
                pl.BlockSpec((1, Hp), const2),                      # b_in
                pl.BlockSpec((Hp, Hp), const2),                     # W_rec (resident)
                pl.BlockSpec((1, Hp), const2),                      # b_rec
                pl.BlockSpec((Hp, Op), const2),                     # W_out (resident)
                pl.BlockSpec((1, Op), const2),                      # b_out
            ],
            out_specs=(
                pl.BlockSpec((1, BM, Op), lambda b, t: (t, b, 0)),  # per-step output
                pl.BlockSpec((BM, Hp), lambda b, t: (b, 0)),        # final hidden
            ),
            scratch_shapes=[pltpu.VMEM((BM, Hp), jnp.float32)],     # carried hidden
        ),
        compiler_params=pltpu.CompilerParams(
            dimension_semantics=("parallel", "arbitrary"),
        ),
    )(x_p, h0_p, w_in_p, b_in_p, w_rec_p, b_rec_p, w_out_p, b_out_p)

    return out_padded[:, :B, :O], h_final_padded[:B, :H]


def rnn_forward_step(x, h, params):
    """Single recurrent step (mirrors module.forward); thin wrapper over the
    sequence kernel with T=1."""
    out, h_new = rnn_forward_sequence(x[None], h, params)
    return out[0], h_new


def init_params(key, input_size, hidden_size, output_size):
    """PyTorch-like nn.Linear init: U(-1/sqrt(fan_in), +1/sqrt(fan_in)).
    Weights stored (in_features, out_features); biases stored (1, out_features)."""
    ks = jax.random.split(key, 6)

    def _layer(kw, kb, fan_in, fan_out):
        bound = 1.0 / jnp.sqrt(jnp.float32(fan_in))
        w = jax.random.uniform(kw, (fan_in, fan_out), jnp.float32, -bound, bound)
        b = jax.random.uniform(kb, (1, fan_out), jnp.float32, -bound, bound)
        return w, b

    w_in, b_in = _layer(ks[0], ks[1], input_size, hidden_size)
    w_rec, b_rec = _layer(ks[2], ks[3], hidden_size, hidden_size)
    w_out, b_out = _layer(ks[4], ks[5], hidden_size, output_size)
    return (w_in, b_in, w_rec, b_rec, w_out, b_out)


def reference_forward_sequence(x_seq, h0, params, matmul_dtype=jnp.float32):
    """Pure-JAX reference. matmul_dtype=bf16 emulates the kernel's MXU numerics."""
    w_in, b_in, w_rec, b_rec, w_out, b_out = params
    wi = w_in.astype(matmul_dtype)
    wr = w_rec.astype(matmul_dtype)
    wo = w_out.astype(matmul_dtype)

    def step(h, x):
        it = jnp.tanh(jnp.dot(x.astype(matmul_dtype), wi,
                              preferred_element_type=jnp.float32) + b_in)
        rec = jnp.tanh(jnp.dot(h.astype(matmul_dtype), wr,
                               preferred_element_type=jnp.float32) + b_rec + it)
        out = jnp.maximum(jnp.dot(rec.astype(matmul_dtype), wo,
                                  preferred_element_type=jnp.float32) + b_out, 0.0)
        return rec, out

    h_final, outs = jax.lax.scan(step, h0, x_seq)
    return outs, h_final


if __name__ == "__main__":
    input_size, hidden_size, output_size = 16, 32, 8
    batch, seq_len = 2, 8

    key = jax.random.PRNGKey(0)
    k_params, k_x = jax.random.split(key)
    params = init_params(k_params, input_size, hidden_size, output_size)

    x_seq = jax.random.normal(k_x, (seq_len, batch, input_size), jnp.float32)
    # hidden_state starts at zero (matches self.hidden_state = torch.zeros(hidden_size))
    h0 = jnp.zeros((batch, hidden_size), jnp.float32)

    out, h_final = rnn_forward_sequence(x_seq, h0, params)
    jax.block_until_ready((out, h_final))

    # Tight check vs a reference that emulates the kernel's bf16-MXU numerics.
    out_ref_b, h_ref_b = reference_forward_sequence(x_seq, h0, params, jnp.bfloat16)
    assert jnp.allclose(out, out_ref_b, atol=5e-3), "output mismatch (bf16 ref)"
    assert jnp.allclose(h_final, h_ref_b, atol=5e-3), "hidden mismatch (bf16 ref)"

    # Looser sanity check vs the pure-f32 reference.
    out_ref_f, h_ref_f = reference_forward_sequence(x_seq, h0, params, jnp.float32)
    assert jnp.allclose(out, out_ref_f, atol=5e-2), "output mismatch (f32 ref)"
    assert jnp.allclose(h_final, h_ref_f, atol=5e-2), "hidden mismatch (f32 ref)"

    # Single-step API (mirrors module.forward) still works.
    out1, h1 = rnn_forward_step(x_seq[0], h0, params)
    jax.block_until_ready((out1, h1))

    print("KERNEL_OK")
</pallas_src>

<mosaic_0001>
module attributes {stable_mosaic.version = 11 : i64} {
  func.func @_rnn_seq_kernel(%arg0: i32, %arg1: i32, %arg2: memref<1x8x16xf32, #tpu.memory_space<vmem>>, %arg3: memref<8x128xf32, #tpu.memory_space<vmem>>, %arg4: memref<16x128xbf16, #tpu.memory_space<vmem>>, %arg5: memref<1x128xf32, #tpu.memory_space<vmem>>, %arg6: memref<128x128xbf16, #tpu.memory_space<vmem>>, %arg7: memref<1x128xf32, #tpu.memory_space<vmem>>, %arg8: memref<128x128xbf16, #tpu.memory_space<vmem>>, %arg9: memref<1x128xf32, #tpu.memory_space<vmem>>, %arg10: memref<1x8x128xf32, #tpu.memory_space<vmem>>, %arg11: memref<8x128xf32, #tpu.memory_space<vmem>>, %arg12: memref<8x128xf32, #tpu.memory_space<vmem>>) attributes {dimension_semantics = [#tpu.dimension_semantics<parallel>, #tpu.dimension_semantics<arbitrary>], iteration_bounds = array<i64: 1, 8>, scalar_prefetch = 0 : i64, scratch_operands = 1 : i64, tpu.core_type = #tpu.core_type<tc>, window_params = [{transform_indices = @transform_0, window_bounds = array<i64: 1, 8, 16>}, {transform_indices = @transform_1, window_bounds = array<i64: 8, 128>}, {pipeline_mode = #tpu.pipeline_mode<synchronous>, transform_indices = @transform_2, window_bounds = array<i64: 16, 128>}, {pipeline_mode = #tpu.pipeline_mode<synchronous>, transform_indices = @transform_3, window_bounds = array<i64: 1, 128>}, {pipeline_mode = #tpu.pipeline_mode<synchronous>, transform_indices = @transform_4, window_bounds = array<i64: 128, 128>}, {pipeline_mode = #tpu.pipeline_mode<synchronous>, transform_indices = @transform_5, window_bounds = array<i64: 1, 128>}, {pipeline_mode = #tpu.pipeline_mode<synchronous>, transform_indices = @transform_6, window_bounds = array<i64: 128, 128>}, {pipeline_mode = #tpu.pipeline_mode<synchronous>, transform_indices = @transform_7, window_bounds = array<i64: 1, 128>}, {transform_indices = @transform_8, window_bounds = array<i64: 1, 8, 128>}, {transform_indices = @transform_9, window_bounds = array<i64: 8, 128>}]} {
    %c0_i32 = arith.constant 0 : i32
    %0 = arith.cmpi eq, %arg1, %c0_i32 : i32
    %1 = arith.extui %0 : i1 to i32
    %c0_i32_0 = arith.constant 0 : i32
    %2 = arith.cmpi ne, %1, %c0_i32_0 : i32
    scf.if %2 {
      %c0_27 = arith.constant 0 : index
      %c0_28 = arith.constant 0 : index
      %34 = vector.load %arg3[%c0_27, %c0_28] : memref<8x128xf32, #tpu.memory_space<vmem>>, vector<8x128xf32>
      %c0_29 = arith.constant 0 : index
      %c0_30 = arith.constant 0 : index
      %35 = vector.load %arg12[%c0_29, %c0_30] : memref<8x128xf32, #tpu.memory_space<vmem>>, vector<8x128xf32>
      tpu.vector_store %arg12[%c0_29, %c0_30], %34 {strides = array<i32>} : memref<8x128xf32, #tpu.memory_space<vmem>>, vector<8x128xf32>,
    } else {
    }
    %c0 = arith.constant 0 : index
    %c0_1 = arith.constant 0 : index
    %c0_2 = arith.constant 0 : index
    %3 = vector.load %arg2[%c0, %c0_1, %c0_2] : memref<1x8x16xf32, #tpu.memory_space<vmem>>, vector<1x8x16xf32>
    %4 = vector.shape_cast %3 : vector<1x8x16xf32> to vector<8x16xf32>
    %c0_3 = arith.constant 0 : index
    %c0_4 = arith.constant 0 : index
    %5 = vector.load %arg12[%c0_3, %c0_4] : memref<8x128xf32, #tpu.memory_space<vmem>>, vector<8x128xf32>
    %6 = arith.truncf %4 : vector<8x16xf32> to vector<8x16xbf16>
    %c0_5 = arith.constant 0 : index
    %c0_6 = arith.constant 0 : index
    %7 = vector.load %arg4[%c0_5, %c0_6] : memref<16x128xbf16, #tpu.memory_space<vmem>>, vector<16x128xbf16>
    %cst = arith.constant dense<0.000000e+00> : vector<8x128xf32>
    %8 = tpu.matmul %6, %7, %cst {dimension_numbers = #tpu.dot_dimension_numbers<[1], [0], [0], [1], [0, 0, 1, 1], [], []>} : vector<8x16xbf16>, vector<16x128xbf16>, vector<8x128xf32> -> vector<8x128xf32>
    %c0_7 = arith.constant 0 : index
    %c0_8 = arith.constant 0 : index
    %9 = vector.load %arg5[%c0_7, %c0_8] : memref<1x128xf32, #tpu.memory_space<vmem>>, vector<1x128xf32>
    %10 = vector.broadcast %9 : vector<1x128xf32> to vector<8x128xf32>
    %11 = arith.addf %8, %10 : vector<8x128xf32>
    %12 = math.tanh %11 : vector<8x128xf32>
    %13 = arith.truncf %5 : vector<8x128xf32> to vector<8x128xbf16>
    %c0_9 = arith.constant 0 : index
    %c0_10 = arith.constant 0 : index
    %14 = vector.load %arg6[%c0_9, %c0_10] : memref<128x128xbf16, #tpu.memory_space<vmem>>, vector<128x128xbf16>
    %cst_11 = arith.constant dense<0.000000e+00> : vector<8x128xf32>
    %15 = tpu.matmul %13, %14, %cst_11 {dimension_numbers = #tpu.dot_dimension_numbers<[1], [0], [0], [1], [0, 0, 1, 1], [], []>} : vector<8x128xbf16>, vector<128x128xbf16>, vector<8x128xf32> -> vector<8x128xf32>
    %c0_12 = arith.constant 0 : index
    %c0_13 = arith.constant 0 : index
    %16 = vector.load %arg7[%c0_12, %c0_13] : memref<1x128xf32, #tpu.memory_space<vmem>>, vector<1x128xf32>
    %17 = vector.broadcast %16 : vector<1x128xf32> to vector<8x128xf32>
    %18 = arith.addf %15, %17 : vector<8x128xf32>
    %19 = arith.addf %18, %12 : vector<8x128xf32>
    %20 = math.tanh %19 : vector<8x128xf32>
    %c0_14 = arith.constant 0 : index
    %c0_15 = arith.constant 0 : index
    %21 = vector.load %arg12[%c0_14, %c0_15] : memref<8x128xf32, #tpu.memory_space<vmem>>, vector<8x128xf32>
    tpu.vector_store %arg12[%c0_14, %c0_15], %20 {strides = array<i32>} : memref<8x128xf32, #tpu.memory_space<vmem>>, vector<8x128xf32>,
    %c0_16 = arith.constant 0 : index
    %c0_17 = arith.constant 0 : index
    %22 = vector.load %arg11[%c0_16, %c0_17] : memref<8x128xf32, #tpu.memory_space<vmem>>, vector<8x128xf32>
    tpu.vector_store %arg11[%c0_16, %c0_17], %20 {strides = array<i32>} : memref<8x128xf32, #tpu.memory_space<vmem>>, vector<8x128xf32>,
    %23 = arith.truncf %20 : vector<8x128xf32> to vector<8x128xbf16>
    %c0_18 = arith.constant 0 : index
    %c0_19 = arith.constant 0 : index
    %24 = vector.load %arg8[%c0_18, %c0_19] : memref<128x128xbf16, #tpu.memory_space<vmem>>, vector<128x128xbf16>
    %cst_20 = arith.constant dense<0.000000e+00> : vector<8x128xf32>
    %25 = tpu.matmul %23, %24, %cst_20 {dimension_numbers = #tpu.dot_dimension_numbers<[1], [0], [0], [1], [0, 0, 1, 1], [], []>} : vector<8x128xbf16>, vector<128x128xbf16>, vector<8x128xf32> -> vector<8x128xf32>
    %c0_21 = arith.constant 0 : index
    %c0_22 = arith.constant 0 : index
    %26 = vector.load %arg9[%c0_21, %c0_22] : memref<1x128xf32, #tpu.memory_space<vmem>>, vector<1x128xf32>
    %27 = vector.broadcast %26 : vector<1x128xf32> to vector<8x128xf32>
    %28 = arith.addf %25, %27 : vector<8x128xf32>
    %cst_23 = arith.constant 0.000000e+00 : f32
    %29 = vector.broadcast %cst_23 : f32 to vector<8x128xf32>
    %30 = arith.maximumf %28, %29 : vector<8x128xf32>
    %c0_24 = arith.constant 0 : index
    %c0_25 = arith.constant 0 : index
    %c0_26 = arith.constant 0 : index
    %31 = vector.load %arg10[%c0_24, %c0_25, %c0_26] : memref<1x8x128xf32, #tpu.memory_space<vmem>>, vector<1x8x128xf32>
    %32 = vector.shape_cast %31 : vector<1x8x128xf32> to vector<8x128xf32>
    %33 = vector.shape_cast %30 : vector<8x128xf32> to vector<1x8x128xf32>
    tpu.vector_store %arg10[%c0_24, %c0_25, %c0_26], %33 {strides = array<i32>} : memref<1x8x128xf32, #tpu.memory_space<vmem>>, vector<1x8x128xf32>,
    return
  }
  func.func @transform_0(%arg0: i32, %arg1: i32) -> (i32, i32, i32) {
    %c0_i32 = arith.constant 0 : i32
    %c0_i32_0 = arith.constant 0 : i32
    return %arg1, %arg0, %c0_i32 : i32, i32, i32
  }
  func.func @transform_1(%arg0: i32, %arg1: i32) -> (i32, i32) {
    %c0_i32 = arith.constant 0 : i32
    %c0_i32_0 = arith.constant 0 : i32
    return %arg0, %c0_i32 : i32, i32
  }
  func.func @transform_2(%arg0: i32, %arg1: i32) -> (i32, i32) {
    %c0_i32 = arith.constant 0 : i32
    %c0_i32_0 = arith.constant 0 : i32
    %c0_i32_1 = arith.constant 0 : i32
    return %c0_i32, %c0_i32_0 : i32, i32
  }
  func.func @transform_3(%arg0: i32, %arg1: i32) -> (i32, i32) {
    %c0_i32 = arith.constant 0 : i32
    %c0_i32_0 = arith.constant 0 : i32
    %c0_i32_1 = arith.constant 0 : i32
    return %c0_i32, %c0_i32_0 : i32, i32
  }
  func.func @transform_4(%arg0: i32, %arg1: i32) -> (i32, i32) {
    %c0_i32 = arith.constant 0 : i32
    %c0_i32_0 = arith.constant 0 : i32
    %c0_i32_1 = arith.constant 0 : i32
    return %c0_i32, %c0_i32_0 : i32, i32
  }
  func.func @transform_5(%arg0: i32, %arg1: i32) -> (i32, i32) {
    %c0_i32 = arith.constant 0 : i32
    %c0_i32_0 = arith.constant 0 : i32
    %c0_i32_1 = arith.constant 0 : i32
    return %c0_i32, %c0_i32_0 : i32, i32
  }
  func.func @transform_6(%arg0: i32, %arg1: i32) -> (i32, i32) {
    %c0_i32 = arith.constant 0 : i32
    %c0_i32_0 = arith.constant 0 : i32
    %c0_i32_1 = arith.constant 0 : i32
    return %c0_i32, %c0_i32_0 : i32, i32
  }
  func.func @transform_7(%arg0: i32, %arg1: i32) -> (i32, i32) {
    %c0_i32 = arith.constant 0 : i32
    %c0_i32_0 = arith.constant 0 : i32
    %c0_i32_1 = arith.constant 0 : i32
    return %c0_i32, %c0_i32_0 : i32, i32
  }
  func.func @transform_8(%arg0: i32, %arg1: i32) -> (i32, i32, i32) {
    %c0_i32 = arith.constant 0 : i32
    %c0_i32_0 = arith.constant 0 : i32
    return %arg1, %arg0, %c0_i32 : i32, i32, i32
  }
  func.func @transform_9(%arg0: i32, %arg1: i32) -> (i32, i32) {
    %c0_i32 = arith.constant 0 : i32
    %c0_i32_0 = arith.constant 0 : i32
    return %arg0, %c0_i32 : i32, i32
  }
}

</mosaic_0001>

<llo_original>
// kernel: rnn_forward_sequence.1
$region0: #{rnn_forward_sequence.1}
  #allocation0 [shape = 'u32[]', space=smem, size = 0x4, offset = 0x4, fixed_abs, tag = 'smem constant byte address 0x4 - core index']
  #allocation1 [shape = 'u32[144,128]{1,0:T(1,128)}', space=vmem, size = 0x12000, scoped, tag = 'internal scratch']
  #allocation2 [shape = 'f32[8,128]{1,0:T(8,128)}', space=vmem, size = 0x1000, scoped, tag = 'scratch operand']
  %s0 = inlined_call_operand.vmem [shape: f32[8,8,16], index: 0, kind: input, shape index: {}]
  %s1 = inlined_call_operand.vmem [shape: f32[8,128], index: 1, kind: input, shape index: {}]
  %s2 = inlined_call_operand.vmem [shape: bf16[16,128], index: 2, kind: input, shape index: {}]
  %s3 = inlined_call_operand.vmem [shape: f32[1,128], index: 3, kind: input, shape index: {}]
  %s4 = inlined_call_operand.vmem [shape: bf16[128,128], index: 4, kind: input, shape index: {}]
  %s5 = inlined_call_operand.vmem [shape: f32[1,128], index: 5, kind: input, shape index: {}]
  %s6 = inlined_call_operand.vmem [shape: bf16[128,128], index: 6, kind: input, shape index: {}]
  %s7 = inlined_call_operand.vmem [shape: f32[1,128], index: 7, kind: input, shape index: {}]
  %s8 = inlined_call_operand.vmem [shape: f32[8,8,128], index: 8, kind: output, shape index: {0}]
  %s9 = inlined_call_operand.vmem [shape: f32[8,128], index: 9, kind: output, shape index: {1}]
  %10 = xla_tuple %s8, %s9
  %s11 = sld [smem:[#allocation0]]
  $region77: #{rnn_forward_sequence.1} parent=0
    _
  %s13 = ssub.s32 1, %s11
  %s14 = scalar_select 0, %s13, %s11
  loop: start=0, step=1, limit=10
  $region2: #{rnn_forward_sequence.1} parent=0 // loop_pre_header
    _
  $region3: #{rnn_forward_sequence.1} parent=0 // loop_header
    %s16 = sphi 0, %s20
    %p17 = scmp.ge.s32.totalorder %s16, 10
    %s23 = sphi 0, %s35
    %s24 = sphi 0, %s31
    %s25 = sphi 0, %s23
    %s26 = sphi 0, %s24
    %s27 = sphi 0, %s25
    %s28 = sphi 0, %s26
    %s40 = sphi 0, %s42
    %s43 = sphi 0, %s40
    %s44 = sphi 0, %s43
    %s60 = sphi 0, %s44
    %s66 = sphi 0, %s68
    %s69 = sphi 0, %s66
    %s70 = sphi 0, %s69
    %s86 = sphi 0, %s70
    %s90 = sphi 0, %s90
    %s92 = sphi 0, %s90
    %s93 = sphi 0, %s92
    %s107 = sphi 0, %s93
    %s111 = sphi 0, %s111
    %s113 = sphi 0, %s111
    %s114 = sphi 0, %s113
    %s128 = sphi 0, %s114
    %s132 = sphi 0, %s132
    %s134 = sphi 0, %s132
    %s135 = sphi 0, %s134
    %s149 = sphi 0, %s135
    %s153 = sphi 0, %s153
    %s155 = sphi 0, %s153
    %s156 = sphi 0, %s155
    %s170 = sphi 0, %s156
    %s174 = sphi 0, %s174
    %s176 = sphi 0, %s174
    %s177 = sphi 0, %s176
    %s191 = sphi 0, %s177
    %s195 = sphi 0, %s195
    %s197 = sphi 0, %s195
    %s198 = sphi 0, %s197
    %s212 = sphi 0, %s198
    %s220 = sphi 0, %s222
    %s223 = sphi 0, %s220
    %s224 = sphi 0, %s223
    %s240 = sphi 0, %s224
    %s246 = sphi 0, %s248
    %s249 = sphi 0, %s246
    %s250 = sphi 0, %s249
    %s266 = sphi 0, %s250
  $region4: #{rnn_forward_sequence.1} parent=0 // loop_header_branch
    %19 = sbr.rel (%p17) target = $region8
  $region5: #{rnn_forward_sequence.1} parent=0 // loop_body
    %s21 = ssub.s32 %s16, 1
    %s22 = ssub.s32 %s16, 2
    %s29 = sadd.s32 1, %s24
    %p30 = scmp.ge.s32.totalorder %s29, 8
    %s31 = scalar_select %p30, 0, %s29
    %s32 = sadd.s32 1, %s23
    %s33 = scalar_select %p30, %s32, %s23
    %p34 = scmp.ge.s32.totalorder %s33, 1
    %s35 = scalar_select %p34, 0, %s33
    %s36 = ssub.s32 %s24, %s31
    %s37 = ssub.s32 %s23, %s35
    %s38 = sor.u32 %s36, %s37
    %p39 = scmp.eq.s32.totalorder %s38, 0
    %s41 = sadd.s32 %s40, 1
    %s42 = scalar_select %p39, %s40, %s41
    %p45 = pneg %p39
    %p46 = scmp.eq.s32.totalorder %s16, 7
    %p47 = por %p45, %p46
    %p48 = scmp.ne.s32.totalorder %s40, %s43
    %p49 = scmp.eq.s32.totalorder %s16, 0
    %p50 = por %p48, %p49
    %p51 = scmp.ne.s32.totalorder %s40, %s43
    %p52 = scmp.eq.s32.totalorder %s21, 7
    %p53 = por %p51, %p52
    %p54 = scmp.ne.s32.totalorder %s43, %s44
    %p55 = scmp.eq.s32.totalorder %s21, 0
    %p56 = por %p54, %p55
    %p57 = scmp.ne.s32.totalorder %s43, %s44
    %p58 = scmp.eq.s32.totalorder %s22, 7
    %p59 = por %p57, %p58
    %p61 = scmp.ne.s32.totalorder %s44, %s60
    %p62 = scmp.eq.s32.totalorder %s22, 0
    %p63 = por %p61, %p62
    %s64 = ssub.s32 %s23, %s35
    %p65 = scmp.eq.s32.totalorder %s64, 0
    %s67 = sadd.s32 %s66, 1
    %s68 = scalar_select %p65, %s66, %s67
    %p71 = pneg %p65
    %p72 = scmp.eq.s32.totalorder %s16, 7
    %p73 = por %p71, %p72
    %p74 = scmp.ne.s32.totalorder %s66, %s69
    %p75 = scmp.eq.s32.totalorder %s16, 0
    %p76 = por %p74, %p75
    %p77 = scmp.ne.s32.totalorder %s66, %s69
    %p78 = scmp.eq.s32.totalorder %s21, 7
    %p79 = por %p77, %p78
    %p80 = scmp.ne.s32.totalorder %s69, %s70
    %p81 = scmp.eq.s32.totalorder %s21, 0
    %p82 = por %p80, %p81
    %p83 = scmp.ne.s32.totalorder %s69, %s70
    %p84 = scmp.eq.s32.totalorder %s22, 7
    %p85 = por %p83, %p84
    %p87 = scmp.ne.s32.totalorder %s70, %s86
    %p88 = scmp.eq.s32.totalorder %s22, 0
    %p89 = por %p87, %p88
    %s91 = sadd.s32 %s90, 1
    %p94 = scmp.eq.s32.totalorder %s16, 7
    %p95 = scmp.ne.s32.totalorder %s90, %s92
    %p96 = scmp.eq.s32.totalorder %s16, 0
    %p97 = por %p95, %p96
    %p98 = scmp.ne.s32.totalorder %s90, %s92
    %p99 = scmp.eq.s32.totalorder %s21, 7
    %p100 = por %p98, %p99
    %p101 = scmp.ne.s32.totalorder %s92, %s93
    %p102 = scmp.eq.s32.totalorder %s21, 0
    %p103 = por %p101, %p102
    %p104 = scmp.ne.s32.totalorder %s92, %s93
    %p105 = scmp.eq.s32.totalorder %s22, 7
    %p106 = por %p104, %p105
    %p108 = scmp.ne.s32.totalorder %s93, %s107
    %p109 = scmp.eq.s32.totalorder %s22, 0
    %p110 = por %p108, %p109
    %s112 = sadd.s32 %s111, 1
    %p115 = scmp.eq.s32.totalorder %s16, 7
    %p116 = scmp.ne.s32.totalorder %s111, %s113
    %p117 = scmp.eq.s32.totalorder %s16, 0
    %p118 = por %p116, %p117
    %p119 = scmp.ne.s32.totalorder %s111, %s113
    %p120 = scmp.eq.s32.totalorder %s21, 7
    %p121 = por %p119, %p120
    %p122 = scmp.ne.s32.totalorder %s113, %s114
    %p123 = scmp.eq.s32.totalorder %s21, 0
    %p124 = por %p122, %p123
    %p125 = scmp.ne.s32.totalorder %s113, %s114
    %p126 = scmp.eq.s32.totalorder %s22, 7
    %p127 = por %p125, %p126
    %p129 = scmp.ne.s32.totalorder %s114, %s128
    %p130 = scmp.eq.s32.totalorder %s22, 0
    %p131 = por %p129, %p130
    %s133 = sadd.s32 %s132, 1
    %p136 = scmp.eq.s32.totalorder %s16, 7
    %p137 = scmp.ne.s32.totalorder %s132, %s134
    %p138 = scmp.eq.s32.totalorder %s16, 0
    %p139 = por %p137, %p138
    %p140 = scmp.ne.s32.totalorder %s132, %s134
    %p141 = scmp.eq.s32.totalorder %s21, 7
    %p142 = por %p140, %p141
    %p143 = scmp.ne.s32.totalorder %s134, %s135
    %p144 = scmp.eq.s32.totalorder %s21, 0
    %p145 = por %p143, %p144
    %p146 = scmp.ne.s32.totalorder %s134, %s135
    %p147 = scmp.eq.s32.totalorder %s22, 7
    %p148 = por %p146, %p147
    %p150 = scmp.ne.s32.totalorder %s135, %s149
    %p151 = scmp.eq.s32.totalorder %s22, 0
    %p152 = por %p150, %p151
    %s154 = sadd.s32 %s153, 1
    %p157 = scmp.eq.s32.totalorder %s16, 7
    %p158 = scmp.ne.s32.totalorder %s153, %s155
    %p159 = scmp.eq.s32.totalorder %s16, 0
    %p160 = por %p158, %p159
    %p161 = scmp.ne.s32.totalorder %s153, %s155
    %p162 = scmp.eq.s32.totalorder %s21, 7
    %p163 = por %p161, %p162
    %p164 = scmp.ne.s32.totalorder %s155, %s156
    %p165 = scmp.eq.s32.totalorder %s21, 0
    %p166 = por %p164, %p165
    %p167 = scmp.ne.s32.totalorder %s155, %s156
    %p168 = scmp.eq.s32.totalorder %s22, 7
    %p169 = por %p167, %p168
    %p171 = scmp.ne.s32.totalorder %s156, %s170
    %p172 = scmp.eq.s32.totalorder %s22, 0
    %p173 = por %p171, %p172
    %s175 = sadd.s32 %s174, 1
    %p178 = scmp.eq.s32.totalorder %s16, 7
    %p179 = scmp.ne.s32.totalorder %s174, %s176
    %p180 = scmp.eq.s32.totalorder %s16, 0
    %p181 = por %p179, %p180
    %p182 = scmp.ne.s32.totalorder %s174, %s176
    %p183 = scmp.eq.s32.totalorder %s21, 7
    %p184 = por %p182, %p183
    %p185 = scmp.ne.s32.totalorder %s176, %s177
    %p186 = scmp.eq.s32.totalorder %s21, 0
    %p187 = por %p185, %p186
    %p188 = scmp.ne.s32.totalorder %s176, %s177
    %p189 = scmp.eq.s32.totalorder %s22, 7
    %p190 = por %p188, %p189
    %p192 = scmp.ne.s32.totalorder %s177, %s191
    %p193 = scmp.eq.s32.totalorder %s22, 0
    %p194 = por %p192, %p193
    %s196 = sadd.s32 %s195, 1
    %p199 = scmp.eq.s32.totalorder %s16, 7
    %p200 = scmp.ne.s32.totalorder %s195, %s197
    %p201 = scmp.eq.s32.totalorder %s16, 0
    %p202 = por %p200, %p201
    %p203 = scmp.ne.s32.totalorder %s195, %s197
    %p204 = scmp.eq.s32.totalorder %s21, 7
    %p205 = por %p203, %p204
    %p206 = scmp.ne.s32.totalorder %s197, %s198
    %p207 = scmp.eq.s32.totalorder %s21, 0
    %p208 = por %p206, %p207
    %p209 = scmp.ne.s32.totalorder %s197, %s198
    %p210 = scmp.eq.s32.totalorder %s22, 7
    %p211 = por %p209, %p210
    %p213 = scmp.ne.s32.totalorder %s198, %s212
    %p214 = scmp.eq.s32.totalorder %s22, 0
    %p215 = por %p213, %p214
    %s216 = ssub.s32 %s24, %s31
    %s217 = ssub.s32 %s23, %s35
    %s218 = sor.u32 %s216, %s217
    %p219 = scmp.eq.s32.totalorder %s218, 0
    %s221 = sadd.s32 %s220, 1
    %s222 = scalar_select %p219, %s220, %s221
    %p225 = pneg %p219
    %p226 = scmp.eq.s32.totalorder %s16, 7
    %p227 = por %p225, %p226
    %p228 = scmp.ne.s32.totalorder %s220, %s223
    %p229 = scmp.eq.s32.totalorder %s16, 0
    %p230 = por %p228, %p229
    %p231 = scmp.ne.s32.totalorder %s220, %s223
    %p232 = scmp.eq.s32.totalorder %s21, 7
    %p233 = por %p231, %p232
    %p234 = scmp.ne.s32.totalorder %s223, %s224
    %p235 = scmp.eq.s32.totalorder %s21, 0
    %p236 = por %p234, %p235
    %p237 = scmp.ne.s32.totalorder %s223, %s224
    %p238 = scmp.eq.s32.totalorder %s22, 7
    %p239 = por %p237, %p238
    %p241 = scmp.ne.s32.totalorder %s224, %s240
    %p242 = scmp.eq.s32.totalorder %s22, 0
    %p243 = por %p241, %p242
    %s244 = ssub.s32 %s23, %s35
    %p245 = scmp.eq.s32.totalorder %s244, 0
    %s247 = sadd.s32 %s246, 1
    %s248 = scalar_select %p245, %s246, %s247
    %p251 = pneg %p245
    %p252 = scmp.eq.s32.totalorder %s16, 7
    %p253 = por %p251, %p252
    %p254 = scmp.ne.s32.totalorder %s246, %s249
    %p255 = scmp.eq.s32.totalorder %s16, 0
    %p256 = por %p254, %p255
    %p257 = scmp.ne.s32.totalorder %s246, %s249
    %p258 = scmp.eq.s32.totalorder %s21, 7
    %p259 = por %p257, %p258
    %p260 = scmp.ne.s32.totalorder %s249, %s250
    %p261 = scmp.eq.s32.totalorder %s21, 0
    %p262 = por %p260, %p261
    %p263 = scmp.ne.s32.totalorder %s249, %s250
    %p264 = scmp.eq.s32.totalorder %s22, 7
    %p265 = por %p263, %p264
    %p267 = scmp.ne.s32.totalorder %s250, %s266
    %p268 = scmp.eq.s32.totalorder %s22, 0
    %p269 = por %p267, %p268
    %p270 = scmp.le.s32.totalorder 1, %s16
    %p271 = scmp.lt.s32.totalorder %s16, 9
    %p272 = pnand %p270, %p271
    %p273 = pneg %p272
    // Predicated region
    $region9: #{rnn_forward_sequence.1} parent=5 // pred_check
      _
    $region10: #{rnn_forward_sequence.1} parent=5 // pred_check_branch
      %275 = sbr.rel (%p272) target = $region12
    $region11: #{rnn_forward_sequence.1} parent=5 // pred_region
      %s276 = ssub.s32 %s16, 1
      // Predicated region
      $region13: #{rnn_forward_sequence.1} parent=11 // pred_check
        %p277 = pneg %p82
      $region14: #{rnn_forward_sequence.1} parent=11 // pred_check_branch
        %279 = sbr.rel (%p277) target = $region16
      $region15: #{rnn_forward_sequence.1} parent=11 // pred_region
        %p280 = scmp.lt.s32.totalorder %s25, 0
        %s281 = scalar_select %p280, %s25, 0
        %s282 = smul.addr %s281, 8
        %s283 = scalar_lea.vmem %s1, %s282
      $region16: #{rnn_forward_sequence.1} parent=11 // pred_fallthru
        _
      // Predicated region
      $region17: #{rnn_forward_sequence.1} parent=11 // pred_check
        %p284 = pneg %p103
      $region18: #{rnn_forward_sequence.1} parent=11 // pred_check_branch
        %286 = sbr.rel (%p284) target = $region20
      $region19: #{rnn_forward_sequence.1} parent=11 // pred_region
        _
      $region20: #{rnn_forward_sequence.1} parent=11 // pred_fallthru
        _
      // Predicated region
      $region21: #{rnn_forward_sequence.1} parent=11 // pred_check
        %p287 = pneg %p124
      $region22: #{rnn_forward_sequence.1} parent=11 // pred_check_branch
        %289 = sbr.rel (%p287) target = $region24
      $region23: #{rnn_forward_sequence.1} parent=11 // pred_region
        _
      $region24: #{rnn_forward_sequence.1} parent=11 // pred_fallthru
        _
      // Predicated region
      $region25: #{rnn_forward_sequence.1} parent=11 // pred_check
        %p290 = pneg %p145
      $region26: #{rnn_forward_sequence.1} parent=11 // pred_check_branch
        %292 = sbr.rel (%p290) target = $region28
      $region27: #{rnn_forward_sequence.1} parent=11 // pred_region
        _
      $region28: #{rnn_forward_sequence.1} parent=11 // pred_fallthru
        _
      // Predicated region
      $region29: #{rnn_forward_sequence.1} parent=11 // pred_check
        %p293 = pneg %p166
      $region30: #{rnn_forward_sequence.1} parent=11 // pred_check_branch
        %295 = sbr.rel (%p293) target = $region32
      $region31: #{rnn_forward_sequence.1} parent=11 // pred_region
        _
      $region32: #{rnn_forward_sequence.1} parent=11 // pred_fallthru
        _
      // Predicated region
      $region33: #{rnn_forward_sequence.1} parent=11 // pred_check
        %p296 = pneg %p187
      $region34: #{rnn_forward_sequence.1} parent=11 // pred_check_branch
        %298 = sbr.rel (%p296) target = $region36
      $region35: #{rnn_forward_sequence.1} parent=11 // pred_region
        _
      $region36: #{rnn_forward_sequence.1} parent=11 // pred_fallthru
        _
      // Predicated region
      $region37: #{rnn_forward_sequence.1} parent=11 // pred_check
        %p299 = pneg %p208
      $region38: #{rnn_forward_sequence.1} parent=11 // pred_check_branch
        %301 = sbr.rel (%p299) target = $region40
      $region39: #{rnn_forward_sequence.1} parent=11 // pred_region
        _
      $region40: #{rnn_forward_sequence.1} parent=11 // pred_fallthru
        _
    $region12: #{rnn_forward_sequence.1} parent=5 // pred_fallthru
      _
    %p302 = scmp.lt.s32.totalorder %s16, 8
    // Predicated region
    $region41: #{rnn_forward_sequence.1} parent=5 // pred_check
      %p303 = pneg %p302
    $region42: #{rnn_forward_sequence.1} parent=5 // pred_check_branch
      %305 = sbr.rel (%p303) target = $region44
    $region43: #{rnn_forward_sequence.1} parent=5 // pred_region
      // Predicated region
      $region45: #{rnn_forward_sequence.1} parent=43 // pred_check
        %p306 = pneg %p50
      $region46: #{rnn_forward_sequence.1} parent=43 // pred_check_branch
        %308 = sbr.rel (%p306) target = $region48
      $region47: #{rnn_forward_sequence.1} parent=43 // pred_region
        %p309 = scmp.lt.s32.totalorder %s24, 7
        %s310 = scalar_select %p309, %s24, 7
        %p311 = scmp.lt.s32.totalorder %s23, 0
        %s312 = scalar_select %p311, %s23, 0
        %s313 = sadd.s32 %s312, %s310
        %s314 = smul.addr %s313, 8
        %s315 = scalar_lea.vmem %s0, %s314
      $region48: #{rnn_forward_sequence.1} parent=43 // pred_fallthru
        _
    $region44: #{rnn_forward_sequence.1} parent=5 // pred_fallthru
      _
    %p316 = scmp.le.s32.totalorder 1, %s16
    %p317 = scmp.lt.s32.totalorder %s16, 9
    %p318 = pnand %p316, %p317
    %p319 = pneg %p318
    // Predicated region
    $region49: #{rnn_forward_sequence.1} parent=5 // pred_check
      _
    $region50: #{rnn_forward_sequence.1} parent=5 // pred_check_branch
      %321 = sbr.rel (%p318) target = $region52
    $region51: #{rnn_forward_sequence.1} parent=5 // pred_region
      %s322 = ssub.s32 %s16, 1
      %p323 = scmp.lt.s32.totalorder %s26, 7
      %s324 = scalar_select %p323, %s26, 7
      %p325 = scmp.lt.s32.totalorder %s25, 0
      %s326 = scalar_select %p325, %s25, 0
      %s327 = sadd.s32 %s326, %s324
      %s328 = smul.addr %s327, 8
      %s329 = scalar_lea.vmem %s0, %s328
      %p330 = pneg %p56
      %p331 = pneg %p53
      %p332 = scmp.lt.s32.totalorder %s25, 0
      %s333 = scalar_select %p332, %s25, 0
      %s334 = smul.addr %s333, 8
      %s335 = scalar_lea.vmem %s1, %s334
      %p336 = pneg %p82
      %p337 = pneg %p79
      %p338 = pneg %p103
      %p339 = pneg %p100
      %p340 = pneg %p124
      %p341 = pneg %p121
      %p342 = pneg %p145
      %p343 = pneg %p142
      %p344 = pneg %p166
      %p345 = pneg %p163
      %p346 = pneg %p187
      %p347 = pneg %p184
      %p348 = pneg %p208
      %p349 = pneg %p205
      %p350 = pneg %p236
      %p351 = pneg %p233
      %p352 = scmp.lt.s32.totalorder %s26, 7
      %s353 = scalar_select %p352, %s26, 7
      %p354 = scmp.lt.s32.totalorder %s25, 0
      %s355 = scalar_select %p354, %s25, 0
      %s356 = sadd.s32 %s355, %s353
      %s357 = smul.addr %s356, 8
      %s358 = scalar_lea.vmem %s8, %s357
      %p359 = pneg %p262
      %p360 = pneg %p259
      %p361 = scmp.lt.s32.totalorder %s25, 0
      %s362 = scalar_select %p361, %s25, 0
      %s363 = smul.addr %s362, 8
      %s364 = scalar_lea.vmem %s9, %s363
      %p365 = scmp.lt.s32.totalorder %s26, 7
      %s366 = scalar_select %p365, %s26, 7
      %p367 = scmp.lt.s32.totalorder %s25, 0
      %s368 = scalar_select %p367, %s25, 0
      %s369 = sadd.s32 %s368, %s366
      %s370 = smul.addr %s369, 8
      %s371 = scalar_lea.vmem %s0, %s370
      %p372 = scmp.lt.s32.totalorder %s25, 0
      %s373 = scalar_select %p372, %s25, 0
      %s374 = smul.addr %s373, 8
      %s375 = scalar_lea.vmem %s1, %s374
      %p376 = scmp.lt.s32.totalorder %s26, 7
      %s377 = scalar_select %p376, %s26, 7
      %p378 = scmp.lt.s32.totalorder %s25, 0
      %s379 = scalar_select %p378, %s25, 0
      %s380 = sadd.s32 %s379, %s377
      %s381 = smul.addr %s380, 8
      %s382 = scalar_lea.vmem %s8, %s381
      %p383 = scmp.lt.s32.totalorder %s25, 0
      %s384 = scalar_select %p383, %s25, 0
      %s385 = smul.addr %s384, 8
      %s386 = scalar_lea.vmem %s9, %s385
      %p388 = scmp.eq.s32.totalorder %s26, 0
      // Predicated region
      $region53: #{rnn_forward_sequence.1} parent=51 // pred_check
        %p389 = pneg %p388
      $region54: #{rnn_forward_sequence.1} parent=51 // pred_check_branch
        %391 = sbr.rel (%p389) target = $region56
      $region55: #{rnn_forward_sequence.1} parent=51 // pred_region
        %v392 = vld [vmem:[%s375] sm:$0xff]
        %393 = vst [vmem:[#allocation2] sm:$0xff] %v392
      $region56: #{rnn_forward_sequence.1} parent=51 // pred_fallthru
        _
      %v394 = vld [vmem:[%s371] sm:$0xff]
      %v395 = vld [vmem:[#allocation2] sm:$0xff]
      %v396 = vpack.c.bf16 %v394, %v394
      %v397 = vld [vmem:[%s2] sm:$0xf]
      %v398 = vld [vmem:[%s2 + $0x4] sm:$0xf]
      %v399 = vld [vmem:[%s3] sm:$0x1]
      %v401 = vlaneseq
      %v402 = vshrl.u32 %v401, 7
      %v403 = vsub.s32 0, %v402
      %v404 = vrot.slane %v399, %v403
      %v408 = vunpack.c.l.b16 %v397
      %v409 = vunpack.c.l.b16 %v398
      %v410 = vpack.c.b16 %v409, %v408
      %vm412 = vcmask 130048
      %v414 = vsel %vm412, %v396, 0
      %416 = vmatprep.subr.bf16.mxu0 0
      %417 = vmatpush1.bf16.msra.mxu0 0
      %418 = vmatprep.subr.bf16.mxu0 0
      %419 = vmatpush1.bf16.msra.mxu0 0
      %420 = vmatprep.subr.bf16.mxu0 0
      %421 = vmatpush1.bf16.msra.mxu0 0
      %422 = vmatprep.subr.bf16.mxu0 0
      %423 = vmatpush1.bf16.msra.mxu0 0
      %424 = vmatprep.subr.bf16.mxu0 0
      %425 = vmatpush1.bf16.msra.mxu0 0
      %426 = vmatprep.subr.bf16.mxu0 0
      %427 = vmatpush1.bf16.msra.mxu0 0
      %428 = vmatprep.subr.bf16.mxu0 0
      %429 = vmatpush1.bf16.msra.mxu0 0
      %430 = vmatprep.subr.bf16.mxu0 0
      %431 = vmatpush1.bf16.msra.mxu0 %v410
      %432 = vmatprep.subr.bf16.mxu0 0
      %433 = vmatpush2.bf16.msra.mxu0 0
      %434 = vmatprep.subr.bf16.mxu0 0
      %435 = vmatpush2.bf16.msra.mxu0 0
      %436 = vmatprep.subr.bf16.mxu0 0
      %437 = vmatpush2.bf16.msra.mxu0 0
      %438 = vmatprep.subr.bf16.mxu0 0
      %439 = vmatpush2.bf16.msra.mxu0 0
      %440 = vmatprep.subr.bf16.mxu0 0
      %441 = vmatpush2.bf16.msra.mxu0 0
      %442 = vmatprep.subr.bf16.mxu0 0
      %443 = vmatpush2.bf16.msra.mxu0 0
      %444 = vmatprep.subr.bf16.mxu0 0
      %445 = vmatpush2.bf16.msra.mxu0 0
      %446 = vmatprep.subr.bf16.mxu0 0
      %447 = vmatpush2.bf16.msra.mxu0 0
      %448 = vmatprep.mubr.bf16.mxu0 0
      %449 = vmatmul.mubr.bf16.gmra.mxu0 %v414
      %v450 = vpop.f32.mrf.mxu0
      %v451 = vadd.f32 %v404, %v450
      %v452 = vpop.f32.mrf.mxu0
      %v453 = vpop.f32.mrf.mxu0
      %v454 = vpop.f32.mrf.mxu0
      %455 = vdwg.mxu0
      %v456 = vtanh.pop %v451
      %v457 = vpack.c.bf16 %v395, %v395
      %v458 = vld [vmem:[%s4] sm:$0xf]
      %v459 = vld [vmem:[%s4 + $0x4] sm:$0xf]
      %v460 = vld [vmem:[%s4 + $0x8] sm:$0xf]
      %v461 = vld [vmem:[%s4 + $0xc] sm:$0xf]
      %v462 = vld [vmem:[%s4 + $0x10] sm:$0xf]
      %v463 = vld [vmem:[%s4 + $0x14] sm:$0xf]
      %v464 = vld [vmem:[%s4 + $0x18] sm:$0xf]
      %v465 = vld [vmem:[%s4 + $0x1c] sm:$0xf]
      %v466 = vld [vmem:[%s4 + $0x20] sm:$0xf]
      %v467 = vld [vmem:[%s4 + $0x24] sm:$0xf]
      %v468 = vld [vmem:[%s4 + $0x28] sm:$0xf]
      %v469 = vld [vmem:[%s4 + $0x2c] sm:$0xf]
      %v470 = vld [vmem:[%s4 + $0x30] sm:$0xf]
      %v471 = vld [vmem:[%s4 + $0x34] sm:$0xf]
      %v472 = vld [vmem:[%s4 + $0x38] sm:$0xf]
      %v473 = vld [vmem:[%s4 + $0x3c] sm:$0xf]
      %v474 = vld [vmem:[%s5] sm:$0x1]
      %v476 = vlaneseq
      %v477 = vshrl.u32 %v476, 7
      %v478 = vsub.s32 0, %v477
      %v479 = vrot.slane %v474, %v478
      %v497 = vunpack.c.l.b16 %v458
      %v498 = vunpack.c.l.b16 %v459
      %v499 = vunpack.c.l.b16 %v460
      %v500 = vunpack.c.l.b16 %v461
      %v501 = vunpack.c.l.b16 %v462
      %v502 = vunpack.c.l.b16 %v463
      %v503 = vunpack.c.l.b16 %v464
      %v504 = vunpack.c.l.b16 %v465
      %v505 = vunpack.c.l.b16 %v466
      %v506 = vunpack.c.l.b16 %v467
      %v507 = vunpack.c.l.b16 %v468
      %v508 = vunpack.c.l.b16 %v469
      %v509 = vunpack.c.l.b16 %v470
      %v510 = vunpack.c.l.b16 %v471
      %v511 = vunpack.c.l.b16 %v472
      %v512 = vunpack.c.l.b16 %v473
      %v513 = vpack.c.b16 %v498, %v497
      %v514 = vpack.c.b16 %v500, %v499
      %v515 = vpack.c.b16 %v502, %v501
      %v516 = vpack.c.b16 %v504, %v503
      %v517 = vpack.c.b16 %v506, %v505
      %v518 = vpack.c.b16 %v508, %v507
      %v519 = vpack.c.b16 %v510, %v509
      %v520 = vpack.c.b16 %v512, %v511
      %529 = vmatprep.subr.bf16.mxu0 0
      %530 = vmatpush1.bf16.msra.mxu0 %v520
      %531 = vmatprep.subr.bf16.mxu0 0
      %532 = vmatpush1.bf16.msra.mxu0 %v519
      %533 = vmatprep.subr.bf16.mxu0 0
      %534 = vmatpush1.bf16.msra.mxu0 %v518
      %535 = vmatprep.subr.bf16.mxu0 0
      %536 = vmatpush1.bf16.msra.mxu0 %v517
      %537 = vmatprep.subr.bf16.mxu0 0
      %538 = vmatpush1.bf16.msra.mxu0 %v516
      %539 = vmatprep.subr.bf16.mxu0 0
      %540 = vmatpush1.bf16.msra.mxu0 %v515
      %541 = vmatprep.subr.bf16.mxu0 0
      %542 = vmatpush1.bf16.msra.mxu0 %v514
      %543 = vmatprep.subr.bf16.mxu0 0
      %544 = vmatpush1.bf16.msra.mxu0 %v513
      %545 = vmatprep.subr.bf16.mxu0 0
      %546 = vmatpush2.bf16.msra.mxu0 0
      %547 = vmatprep.subr.bf16.mxu0 0
      %548 = vmatpush2.bf16.msra.mxu0 0
      %549 = vmatprep.subr.bf16.mxu0 0
      %550 = vmatpush2.bf16.msra.mxu0 0
      %551 = vmatprep.subr.bf16.mxu0 0
      %552 = vmatpush2.bf16.msra.mxu0 0
      %553 = vmatprep.subr.bf16.mxu0 0
      %554 = vmatpush2.bf16.msra.mxu0 0
      %555 = vmatprep.subr.bf16.mxu0 0
      %556 = vmatpush2.bf16.msra.mxu0 0
      %557 = vmatprep.subr.bf16.mxu0 0
      %558 = vmatpush2.bf16.msra.mxu0 0
      %559 = vmatprep.subr.bf16.mxu0 0
      %560 = vmatpush2.bf16.msra.mxu0 0
      %561 = vmatprep.mubr.bf16.mxu0 0
      %562 = vmatmul.mubr.bf16.gmra.mxu0 %v457
      %v563 = vpop.f32.mrf.mxu0
      %v564 = vadd.f32 %v479, %v563
      %v565 = vpop.f32.mrf.mxu0
      %v566 = vpop.f32.mrf.mxu0
      %v567 = vpop.f32.mrf.mxu0
      %568 = vdwg.mxu0
      %v569 = vadd.f32 %v564, %v456
      %v570 = vtanh.pop %v569
      %571 = vst [vmem:[#allocation2] sm:$0xff] %v570
      %572 = vst [vmem:[%s386] sm:$0xff] %v570
      %v573 = vpack.c.bf16 %v570, %v570
      %v574 = vld [vmem:[%s6] sm:$0xf]
      %v575 = vld [vmem:[%s6 + $0x4] sm:$0xf]
      %v576 = vld [vmem:[%s6 + $0x8] sm:$0xf]
      %v577 = vld [vmem:[%s6 + $0xc] sm:$0xf]
      %v578 = vld [vmem:[%s6 + $0x10] sm:$0xf]
      %v579 = vld [vmem:[%s6 + $0x14] sm:$0xf]
      %v580 = vld [vmem:[%s6 + $0x18] sm:$0xf]
      %v581 = vld [vmem:[%s6 + $0x1c] sm:$0xf]
      %v582 = vld [vmem:[%s6 + $0x20] sm:$0xf]
      %v583 = vld [vmem:[%s6 + $0x24] sm:$0xf]
      %v584 = vld [vmem:[%s6 + $0x28] sm:$0xf]
      %v585 = vld [vmem:[%s6 + $0x2c] sm:$0xf]
      %v586 = vld [vmem:[%s6 + $0x30] sm:$0xf]
      %v587 = vld [vmem:[%s6 + $0x34] sm:$0xf]
      %v588 = vld [vmem:[%s6 + $0x38] sm:$0xf]
      %v589 = vld [vmem:[%s6 + $0x3c] sm:$0xf]
      %v590 = vld [vmem:[%s7] sm:$0x1]
      %v592 = vlaneseq
      %v593 = vshrl.u32 %v592, 7
      %v594 = vsub.s32 0, %v593
      %v595 = vrot.slane %v590, %v594
      %v613 = vunpack.c.l.b16 %v574
      %v614 = vunpack.c.l.b16 %v575
      %v615 = vunpack.c.l.b16 %v576
      %v616 = vunpack.c.l.b16 %v577
      %v617 = vunpack.c.l.b16 %v578
      %v618 = vunpack.c.l.b16 %v579
      %v619 = vunpack.c.l.b16 %v580
      %v620 = vunpack.c.l.b16 %v581
      %v621 = vunpack.c.l.b16 %v582
      %v622 = vunpack.c.l.b16 %v583
      %v623 = vunpack.c.l.b16 %v584
      %v624 = vunpack.c.l.b16 %v585
      %v625 = vunpack.c.l.b16 %v586
      %v626 = vunpack.c.l.b16 %v587
      %v627 = vunpack.c.l.b16 %v588
      %v628 = vunpack.c.l.b16 %v589
      %v629 = vpack.c.b16 %v614, %v613
      %v630 = vpack.c.b16 %v616, %v615
      %v631 = vpack.c.b16 %v618, %v617
      %v632 = vpack.c.b16 %v620, %v619
      %v633 = vpack.c.b16 %v622, %v621
      %v634 = vpack.c.b16 %v624, %v623
      %v635 = vpack.c.b16 %v626, %v625
      %v636 = vpack.c.b16 %v628, %v627
      %645 = vmatprep.subr.bf16.mxu0 0
      %646 = vmatpush1.bf16.msra.mxu0 %v636
      %647 = vmatprep.subr.bf16.mxu0 0
      %648 = vmatpush1.bf16.msra.mxu0 %v635
      %649 = vmatprep.subr.bf16.mxu0 0
      %650 = vmatpush1.bf16.msra.mxu0 %v634
      %651 = vmatprep.subr.bf16.mxu0 0
      %652 = vmatpush1.bf16.msra.mxu0 %v633
      %653 = vmatprep.subr.bf16.mxu0 0
      %654 = vmatpush1.bf16.msra.mxu0 %v632
      %655 = vmatprep.subr.bf16.mxu0 0
      %656 = vmatpush1.bf16.msra.mxu0 %v631
      %657 = vmatprep.subr.bf16.mxu0 0
      %658 = vmatpush1.bf16.msra.mxu0 %v630
      %659 = vmatprep.subr.bf16.mxu0 0
      %660 = vmatpush1.bf16.msra.mxu0 %v629
      %661 = vmatprep.subr.bf16.mxu0 0
      %662 = vmatpush2.bf16.msra.mxu0 0
      %663 = vmatprep.subr.bf16.mxu0 0
      %664 = vmatpush2.bf16.msra.mxu0 0
      %665 = vmatprep.subr.bf16.mxu0 0
      %666 = vmatpush2.bf16.msra.mxu0 0
      %667 = vmatprep.subr.bf16.mxu0 0
      %668 = vmatpush2.bf16.msra.mxu0 0
      %669 = vmatprep.subr.bf16.mxu0 0
      %670 = vmatpush2.bf16.msra.mxu0 0
      %671 = vmatprep.subr.bf16.mxu0 0
      %672 = vmatpush2.bf16.msra.mxu0 0
      %673 = vmatprep.subr.bf16.mxu0 0
      %674 = vmatpush2.bf16.msra.mxu0 0
      %675 = vmatprep.subr.bf16.mxu0 0
      %676 = vmatpush2.bf16.msra.mxu0 0
      %677 = vmatprep.mubr.bf16.mxu0 0
      %678 = vmatmul.mubr.bf16.gmra.mxu0 %v573
      %v679 = vpop.f32.mrf.mxu0
      %v680 = vadd.f32 %v595, %v679
      %v681 = vpop.f32.mrf.mxu0
      %v682 = vpop.f32.mrf.mxu0
      %v683 = vpop.f32.mrf.mxu0
      %684 = vdwg.mxu0
      %v685 = vmax.f32 %v680, 0.0
      %686 = vst [vmem:[%s382] sm:$0xff] %v685
      %p687 = scmp.lt.s32.totalorder %s26, 7
      %s688 = scalar_select %p687, %s26, 7
      %p689 = scmp.lt.s32.totalorder %s25, 0
      %s690 = scalar_select %p689, %s25, 0
      %s691 = sadd.s32 %s690, %s688
      %s692 = smul.addr %s691, 8
      %s693 = scalar_lea.vmem %s8, %s692
      %p694 = scmp.lt.s32.totalorder %s25, 0
      %s695 = scalar_select %p694, %s25, 0
      %s696 = smul.addr %s695, 8
      %s697 = scalar_lea.vmem %s9, %s696
      // Predicated region
      $region57: #{rnn_forward_sequence.1} parent=51 // pred_check
        %p698 = pneg %p233
      $region58: #{rnn_forward_sequence.1} parent=51 // pred_check_branch
        %700 = sbr.rel (%p698) target = $region60
      $region59: #{rnn_forward_sequence.1} parent=51 // pred_region
        _
      $region60: #{rnn_forward_sequence.1} parent=51 // pred_fallthru
        _
      // Predicated region
      $region61: #{rnn_forward_sequence.1} parent=51 // pred_check
        %p701 = pneg %p259
      $region62: #{rnn_forward_sequence.1} parent=51 // pred_check_branch
        %703 = sbr.rel (%p701) target = $region64
      $region63: #{rnn_forward_sequence.1} parent=51 // pred_region
        _
      $region64: #{rnn_forward_sequence.1} parent=51 // pred_fallthru
        _
      // Predicated region
      $region65: #{rnn_forward_sequence.1} parent=51 // pred_check
        %p704 = pneg %p259
      $region66: #{rnn_forward_sequence.1} parent=51 // pred_check_branch
        %706 = sbr.rel (%p704) target = $region68
      $region67: #{rnn_forward_sequence.1} parent=51 // pred_region
        %p707 = scmp.lt.s32.totalorder %s25, 0
        %s708 = scalar_select %p707, %s25, 0
        %s709 = smul.addr %s708, 8
        %s710 = scalar_lea.vmem %s9, %s709
      $region68: #{rnn_forward_sequence.1} parent=51 // pred_fallthru
        _
    $region52: #{rnn_forward_sequence.1} parent=5 // pred_fallthru
      _
    %p711 = scmp.le.s32.totalorder 2, %s16
    // Predicated region
    $region69: #{rnn_forward_sequence.1} parent=5 // pred_check
      %p712 = pneg %p711
    $region70: #{rnn_forward_sequence.1} parent=5 // pred_check_branch
      %714 = sbr.rel (%p712) target = $region72
    $region71: #{rnn_forward_sequence.1} parent=5 // pred_region
      %s715 = ssub.s32 %s16, 2
      // Predicated region
      $region73: #{rnn_forward_sequence.1} parent=71 // pred_check
        %p716 = pneg %p239
      $region74: #{rnn_forward_sequence.1} parent=71 // pred_check_branch
        %718 = sbr.rel (%p716) target = $region76
      $region75: #{rnn_forward_sequence.1} parent=71 // pred_region
        %p719 = scmp.lt.s32.totalorder %s28, 7
        %s720 = scalar_select %p719, %s28, 7
        %p721 = scmp.lt.s32.totalorder %s27, 0
        %s722 = scalar_select %p721, %s27, 0
        %s723 = sadd.s32 %s722, %s720
        %s724 = smul.addr %s723, 8
        %s725 = scalar_lea.vmem %s8, %s724
      $region76: #{rnn_forward_sequence.1} parent=71 // pred_fallthru
        _
    $region72: #{rnn_forward_sequence.1} parent=5 // pred_fallthru
      _
  $region6: #{rnn_forward_sequence.1} parent=0 // loop_footer
    %s20 = sadd.s32 1, %s16
  $region7: #{rnn_forward_sequence.1} parent=0 // loop_footer_branch
    %15 = sbr.rel target = $region3
  $region8: #{rnn_forward_sequence.1} parent=0 // loop_exit
    _

</llo_original>
